<compile_context>
chip_gen: v6e
topology: v6e:2x2x1
jax: 0.10.0
libtpu: 0.0.40
codegen_flags: <defaults>
</compile_context>

<pallas_src>
import functools

import jax
import jax.numpy as jnp
from jax import lax
from jax.experimental import pallas as pl
from jax.experimental.pallas import tpu as pltpu


def _round_up(x, m):
    return ((x + m - 1) // m) * m


def _tpu_params():
    """Best-effort, exception-safe chip query for tiling decisions."""
    vmem_bytes = 128 * 1024 * 1024
    cores = 0
    try:
        info = pltpu.get_tpu_info()
        vmem_bytes = int(getattr(info, "vmem_capacity_bytes", vmem_bytes))
        cores = int(getattr(info, "num_cores", 0) or 0)
    except Exception:
        pass
    if cores <= 0:
        # Heuristic: v7x exposes 64 MiB of VMEM per TensorCore and has two of
        # them; v5e / v6e expose 128 MiB and have a single TensorCore.
        cores = 2 if vmem_bytes <= 96 * 1024 * 1024 else 1
    if vmem_bytes <= 96 * 1024 * 1024:          # v7x-like (64 MiB VMEM / TC)
        target_elems = 2 * 1024 * 1024          # ~8 MiB f32-equivalent block
        vmem_limit = 40 * 1024 * 1024
    else:                                       # v5e / v6e (128 MiB VMEM)
        target_elems = 3 * 1024 * 1024          # ~12 MiB f32-equivalent block
        vmem_limit = 64 * 1024 * 1024
    return cores, target_elems, vmem_limit


_CORES, _TARGET_ELEMS, _VMEM_LIMIT = _tpu_params()


def _make_sumsq_kernel(M, tile_m, bps):
    """sum(x^2) over rows, accumulated into a resident (1, 1, R) f32 block."""

    def kernel(x_ref, out_ref):
        c = pl.program_id(0)          # core split        ("parallel")
        i = pl.program_id(1)          # reduction blocks  ("arbitrary")

        @pl.when(i == 0)
        def _():
            out_ref[...] = jnp.zeros_like(out_ref)

        x = x_ref[...].astype(jnp.float32)
        sq = x * x
        rows_valid = M - (c * bps + i) * tile_m   # <= 0 for phantom blocks

        # Common path: full block, no masking (mostly plain VPU vreg adds plus
        # one small cross-sublane reduce per step).
        @pl.when(rows_valid >= tile_m)
        def _():
            out_ref[...] += jnp.sum(sq, axis=0, keepdims=True)[None]

        # Ragged tail block: out-of-bounds rows hold unspecified data and must
        # be masked out before the reduction.
        @pl.when(jnp.logical_and(rows_valid > 0, rows_valid < tile_m))
        def _():
            rid = lax.broadcasted_iota(jnp.int32, sq.shape, 0)
            masked = jnp.where(rid < rows_valid, sq, 0.0)
            out_ref[...] += jnp.sum(masked, axis=0, keepdims=True)[None]
        # rows_valid <= 0: phantom block created by the core split -> skip.

    return kernel


def _factor_sumsq(f, target_elems):
    """sum(f ** 2) in f32, streaming `f` straight from HBM (no extra copies)."""
    if f.size == 0:
        return jnp.float32(0.0)
    if f.ndim == 0:
        x = f.astype(jnp.float32)
        return x * x
    if f.ndim == 2:
        f2d = f                                    # zero-copy
    elif f.ndim == 1:
        f2d = f.reshape(1, f.shape[0])
    else:
        f2d = f.reshape(-1, f.shape[-1])           # collapse leading dims

    M, R = f2d.shape
    r_pad = _round_up(R, 128)

    if 8 * r_pad > target_elems:
        # Degenerate layout (enormous last dim): plain XLA reduction instead
        # of risking VMEM pressure with a gigantic single-row-group block.
        x = f2d.astype(jnp.float32)
        return jnp.sum(x * x)

    tile_m = max(8, (target_elems // r_pad) // 8 * 8)
    if tile_m >= M:
        tile_m = M        # single full block; full-dim needs no 8-alignment
    nblocks = pl.cdiv(M, tile_m)

    nsplit = 2 if (_CORES >= 2 and nblocks >= 4) else 1
    bps = pl.cdiv(nblocks, nsplit)

    def x_index_map(c, i):
        # Clamp so the phantom block of an odd split never DMAs out of bounds;
        # its contribution is masked to zero inside the kernel.
        return (jnp.minimum(c * bps + i, nblocks - 1), 0)

    partial = pl.pallas_call(
        _make_sumsq_kernel(M, tile_m, bps),
        out_shape=jax.ShapeDtypeStruct((nsplit, 1, R), jnp.float32),
        grid=(nsplit, bps),
        in_specs=[pl.BlockSpec((tile_m, R), x_index_map)],
        out_specs=pl.BlockSpec((1, 1, R), lambda c, i: (c, 0, 0)),
        compiler_params=pltpu.CompilerParams(
            dimension_semantics=("parallel", "arbitrary"),
            vmem_limit_bytes=_VMEM_LIMIT,
        ),
    )(f2d)
    return jnp.sum(partial)


@functools.partial(jax.jit, static_argnames=("target_elems",))
def _f2_forward_jit(factors, weight, target_elems=_TARGET_ELEMS):
    total = jnp.float32(0.0)
    for f in factors:
        total = total + _factor_sumsq(f, target_elems)
    batch = factors[0].shape[0]
    return weight.astype(jnp.float32) * total / jnp.float32(batch)


def f2_forward(factors, weight, target_elems=_TARGET_ELEMS):
    """JAX/Pallas equivalent of F2(weight).forward(factors)."""
    return _f2_forward_jit(tuple(factors), jnp.float32(weight),
                           target_elems=target_elems)


def _f2_reference(factors, weight):
    """Pure-JAX reference for correctness checking."""
    norm = jnp.float32(0.0)
    for f in factors:
        norm = norm + jnp.float32(weight) * jnp.sum(f.astype(jnp.float32) ** 2)
    return norm / jnp.float32(factors[0].shape[0])


if __name__ == "__main__":
    key = jax.random.PRNGKey(0)
    weight = 0.05

    # Small shapes consistent with a KG-embedding regularizer call:
    # three factor embeddings (head / relation / tail) of shape (batch, rank).
    batch, rank = 16, 32
    k0, k1, k2, k3, k4 = jax.random.split(key, 5)
    factors = (
        jax.random.normal(k0, (batch, rank), dtype=jnp.float32),
        jax.random.normal(k1, (batch, rank), dtype=jnp.float32),
        jax.random.normal(k2, (batch, rank), dtype=jnp.float32),
    )
    out = jax.block_until_ready(f2_forward(factors, weight))
    ref = jax.block_until_ready(_f2_reference(factors, weight))
    assert jnp.allclose(out, ref, rtol=1e-5, atol=1e-5), (out, ref)

    # Second check: a tiny block target forces multi-block tiling, a ragged
    # tail block and a mixed-dtype (bf16) factor, exercising the masked /
    # core-split paths without needing huge inputs.
    factors2 = (
        jax.random.normal(k3, (100, 48), dtype=jnp.float32),
        jax.random.normal(k4, (100, 48), dtype=jnp.float32).astype(jnp.bfloat16),
    )
    out2 = jax.block_until_ready(f2_forward(factors2, weight, target_elems=1024))
    ref2 = jax.block_until_ready(_f2_reference(factors2, weight))
    assert jnp.allclose(out2, ref2, rtol=1e-4, atol=1e-4), (out2, ref2)

    print("KERNEL_OK")
</pallas_src>

<mosaic_0001>
module attributes {stable_mosaic.version = 11 : i64} {
  func.func @kernel(%arg0: i32, %arg1: i32, %arg2: memref<16x32xf32, #tpu.memory_space<vmem>>, %arg3: memref<1x1x32xf32, #tpu.memory_space<vmem>>) attributes {dimension_semantics = [#tpu.dimension_semantics<parallel>, #tpu.dimension_semantics<arbitrary>], iteration_bounds = array<i64: 1, 1>, scalar_prefetch = 0 : i64, scratch_operands = 0 : i64, tpu.core_type = #tpu.core_type<tc>, window_params = [{transform_indices = @transform_0, window_bounds = array<i64: 16, 32>}, {transform_indices = @transform_1, window_bounds = array<i64: 1, 1, 32>}]} {
    %c0_i32 = arith.constant 0 : i32
    %0 = arith.cmpi eq, %arg1, %c0_i32 : i32
    %1 = arith.extui %0 : i1 to i32
    %c0_i32_0 = arith.constant 0 : i32
    %2 = arith.cmpi ne, %1, %c0_i32_0 : i32
    scf.if %2 {
      %cst = arith.constant 0.000000e+00 : f32
      %17 = vector.broadcast %cst : f32 to vector<1x1x32xf32>
      %c0_8 = arith.constant 0 : index
      %c0_9 = arith.constant 0 : index
      %c0_10 = arith.constant 0 : index
      %18 = vector.load %arg3[%c0_8, %c0_9, %c0_10] : memref<1x1x32xf32, #tpu.memory_space<vmem>>, vector<1x1x32xf32>
      tpu.vector_store %arg3[%c0_8, %c0_9, %c0_10], %17 {strides = array<i32>} : memref<1x1x32xf32, #tpu.memory_space<vmem>>, vector<1x1x32xf32>,
    } else {
    }
    %c0 = arith.constant 0 : index
    %c0_1 = arith.constant 0 : index
    %3 = vector.load %arg2[%c0, %c0_1] : memref<16x32xf32, #tpu.memory_space<vmem>>, vector<16x32xf32>
    %4 = arith.mulf %3, %3 : vector<16x32xf32>
    %c1_i32 = arith.constant 1 : i32
    %5 = arith.muli %arg0, %c1_i32 : i32
    %6 = arith.addi %5, %arg1 : i32
    %c16_i32 = arith.constant 16 : i32
    %7 = arith.muli %6, %c16_i32 : i32
    %c16_i32_2 = arith.constant 16 : i32
    %8 = arith.subi %c16_i32_2, %7 : i32
    %c16_i32_3 = arith.constant 16 : i32
    %9 = arith.cmpi sge, %8, %c16_i32_3 : i32
    %10 = arith.extui %9 : i1 to i32
    %c0_i32_4 = arith.constant 0 : i32
    %11 = arith.cmpi ne, %10, %c0_i32_4 : i32
    scf.if %11 {
      %c0_8 = arith.constant 0 : index
      %c0_9 = arith.constant 0 : index
      %c0_10 = arith.constant 0 : index
      %17 = vector.load %arg3[%c0_8, %c0_9, %c0_10] : memref<1x1x32xf32, #tpu.memory_space<vmem>>, vector<1x1x32xf32>
      %cst = arith.constant dense<0.000000e+00> : vector<32xf32>
      %18 = vector.multi_reduction <add>, %4, %cst [0] : vector<16x32xf32> to vector<32xf32>
      %19 = vector.shape_cast %18 : vector<32xf32> to vector<1x32xf32>
      %20 = vector.shape_cast %19 : vector<1x32xf32> to vector<1x1x32xf32>
      %21 = arith.addf %17, %20 : vector<1x1x32xf32>
      %c0_11 = arith.constant 0 : index
      %c0_12 = arith.constant 0 : index
      %c0_13 = arith.constant 0 : index
      %22 = vector.load %arg3[%c0_11, %c0_12, %c0_13] : memref<1x1x32xf32, #tpu.memory_space<vmem>>, vector<1x1x32xf32>
      tpu.vector_store %arg3[%c0_11, %c0_12, %c0_13], %21 {strides = array<i32>} : memref<1x1x32xf32, #tpu.memory_space<vmem>>, vector<1x1x32xf32>,
    } else {
    }
    %c0_i32_5 = arith.constant 0 : i32
    %12 = arith.cmpi sgt, %8, %c0_i32_5 : i32
    %c16_i32_6 = arith.constant 16 : i32
    %13 = arith.cmpi slt, %8, %c16_i32_6 : i32
    %14 = arith.andi %12, %13 : i1
    %15 = arith.extui %14 : i1 to i32
    %c0_i32_7 = arith.constant 0 : i32
    %16 = arith.cmpi ne, %15, %c0_i32_7 : i32
    scf.if %16 {
      %17 = tpu.iota {dimensions = array<i32: 0>} : vector<16x32xi32>
      %18 = vector.broadcast %8 : i32 to vector<16x32xi32>
      %19 = arith.cmpi slt, %17, %18 : vector<16x32xi32>
      %cst = arith.constant 0.000000e+00 : f32
      %20 = vector.broadcast %cst : f32 to vector<16x32xf32>
      %21 = arith.select %19, %4, %20 : vector<16x32xi1>, vector<16x32xf32>
      %c0_8 = arith.constant 0 : index
      %c0_9 = arith.constant 0 : index
      %c0_10 = arith.constant 0 : index
      %22 = vector.load %arg3[%c0_8, %c0_9, %c0_10] : memref<1x1x32xf32, #tpu.memory_space<vmem>>, vector<1x1x32xf32>
      %cst_11 = arith.constant dense<0.000000e+00> : vector<32xf32>
      %23 = vector.multi_reduction <add>, %21, %cst_11 [0] : vector<16x32xf32> to vector<32xf32>
      %24 = vector.shape_cast %23 : vector<32xf32> to vector<1x32xf32>
      %25 = vector.shape_cast %24 : vector<1x32xf32> to vector<1x1x32xf32>
      %26 = arith.addf %22, %25 : vector<1x1x32xf32>
      %c0_12 = arith.constant 0 : index
      %c0_13 = arith.constant 0 : index
      %c0_14 = arith.constant 0 : index
      %27 = vector.load %arg3[%c0_12, %c0_13, %c0_14] : memref<1x1x32xf32, #tpu.memory_space<vmem>>, vector<1x1x32xf32>
      tpu.vector_store %arg3[%c0_12, %c0_13, %c0_14], %26 {strides = array<i32>} : memref<1x1x32xf32, #tpu.memory_space<vmem>>, vector<1x1x32xf32>,
    } else {
    }
    return
  }
  func.func @transform_0(%arg0: i32, %arg1: i32) -> (i32, i32) {
    %c1_i32 = arith.constant 1 : i32
    %0 = arith.muli %arg0, %c1_i32 : i32
    %1 = arith.addi %0, %arg1 : i32
    %c0_i32 = arith.constant 0 : i32
    %2 = arith.minsi %1, %c0_i32 : i32
    %c0_i32_0 = arith.constant 0 : i32
    %c0_i32_1 = arith.constant 0 : i32
    return %2, %c0_i32_0 : i32, i32
  }
  func.func @transform_1(%arg0: i32, %arg1: i32) -> (i32, i32, i32) {
    %c0_i32 = arith.constant 0 : i32
    %c0_i32_0 = arith.constant 0 : i32
    %c0_i32_1 = arith.constant 0 : i32
    return %arg0, %c0_i32, %c0_i32_0 : i32, i32, i32
  }
}

module attributes {stable_mosaic.version = 11 : i64} {
  func.func @kernel(%arg0: i32, %arg1: i32, %arg2: memref<16x32xf32, #tpu.memory_space<vmem>>, %arg3: memref<1x1x32xf32, #tpu.memory_space<vmem>>) attributes {dimension_semantics = [#tpu.dimension_semantics<parallel>, #tpu.dimension_semantics<arbitrary>], iteration_bounds = array<i64: 1, 1>, scalar_prefetch = 0 : i64, scratch_operands = 0 : i64, tpu.core_type = #tpu.core_type<tc>, window_params = [{transform_indices = @transform_0, window_bounds = array<i64: 16, 32>}, {transform_indices = @transform_1, window_bounds = array<i64: 1, 1, 32>}]} {
    %c0_i32 = arith.constant 0 : i32
    %0 = arith.cmpi eq, %arg1, %c0_i32 : i32
    %1 = arith.extui %0 : i1 to i32
    %c0_i32_0 = arith.constant 0 : i32
    %2 = arith.cmpi ne, %1, %c0_i32_0 : i32
    scf.if %2 {
      %cst = arith.constant 0.000000e+00 : f32
      %17 = vector.broadcast %cst : f32 to vector<1x1x32xf32>
      %c0_8 = arith.constant 0 : index
      %c0_9 = arith.constant 0 : index
      %c0_10 = arith.constant 0 : index
      %18 = vector.load %arg3[%c0_8, %c0_9, %c0_10] : memref<1x1x32xf32, #tpu.memory_space<vmem>>, vector<1x1x32xf32>
      tpu.vector_store %arg3[%c0_8, %c0_9, %c0_10], %17 {strides = array<i32>} : memref<1x1x32xf32, #tpu.memory_space<vmem>>, vector<1x1x32xf32>,
    } else {
    }
    %c0 = arith.constant 0 : index
    %c0_1 = arith.constant 0 : index
    %3 = vector.load %arg2[%c0, %c0_1] : memref<16x32xf32, #tpu.memory_space<vmem>>, vector<16x32xf32>
    %4 = arith.mulf %3, %3 : vector<16x32xf32>
    %c1_i32 = arith.constant 1 : i32
    %5 = arith.muli %arg0, %c1_i32 : i32
    %6 = arith.addi %5, %arg1 : i32
    %c16_i32 = arith.constant 16 : i32
    %7 = arith.muli %6, %c16_i32 : i32
    %c16_i32_2 = arith.constant 16 : i32
    %8 = arith.subi %c16_i32_2, %7 : i32
    %c16_i32_3 = arith.constant 16 : i32
    %9 = arith.cmpi sge, %8, %c16_i32_3 : i32
    %10 = arith.extui %9 : i1 to i32
    %c0_i32_4 = arith.constant 0 : i32
    %11 = arith.cmpi ne, %10, %c0_i32_4 : i32
    scf.if %11 {
      %c0_8 = arith.constant 0 : index
      %c0_9 = arith.constant 0 : index
      %c0_10 = arith.constant 0 : index
      %17 = vector.load %arg3[%c0_8, %c0_9, %c0_10] : memref<1x1x32xf32, #tpu.memory_space<vmem>>, vector<1x1x32xf32>
      %cst = arith.constant dense<0.000000e+00> : vector<32xf32>
      %18 = vector.multi_reduction <add>, %4, %cst [0] : vector<16x32xf32> to vector<32xf32>
      %19 = vector.shape_cast %18 : vector<32xf32> to vector<1x32xf32>
      %20 = vector.shape_cast %19 : vector<1x32xf32> to vector<1x1x32xf32>
      %21 = arith.addf %17, %20 : vector<1x1x32xf32>
      %c0_11 = arith.constant 0 : index
      %c0_12 = arith.constant 0 : index
      %c0_13 = arith.constant 0 : index
      %22 = vector.load %arg3[%c0_11, %c0_12, %c0_13] : memref<1x1x32xf32, #tpu.memory_space<vmem>>, vector<1x1x32xf32>
      tpu.vector_store %arg3[%c0_11, %c0_12, %c0_13], %21 {strides = array<i32>} : memref<1x1x32xf32, #tpu.memory_space<vmem>>, vector<1x1x32xf32>,
    } else {
    }
    %c0_i32_5 = arith.constant 0 : i32
    %12 = arith.cmpi sgt, %8, %c0_i32_5 : i32
    %c16_i32_6 = arith.constant 16 : i32
    %13 = arith.cmpi slt, %8, %c16_i32_6 : i32
    %14 = arith.andi %12, %13 : i1
    %15 = arith.extui %14 : i1 to i32
    %c0_i32_7 = arith.constant 0 : i32
    %16 = arith.cmpi ne, %15, %c0_i32_7 : i32
    scf.if %16 {
      %17 = tpu.iota {dimensions = array<i32: 0>} : vector<16x32xi32>
      %18 = vector.broadcast %8 : i32 to vector<16x32xi32>
      %19 = arith.cmpi slt, %17, %18 : vector<16x32xi32>
      %cst = arith.constant 0.000000e+00 : f32
      %20 = vector.broadcast %cst : f32 to vector<16x32xf32>
      %21 = arith.select %19, %4, %20 : vector<16x32xi1>, vector<16x32xf32>
      %c0_8 = arith.constant 0 : index
      %c0_9 = arith.constant 0 : index
      %c0_10 = arith.constant 0 : index
      %22 = vector.load %arg3[%c0_8, %c0_9, %c0_10] : memref<1x1x32xf32, #tpu.memory_space<vmem>>, vector<1x1x32xf32>
      %cst_11 = arith.constant dense<0.000000e+00> : vector<32xf32>
      %23 = vector.multi_reduction <add>, %21, %cst_11 [0] : vector<16x32xf32> to vector<32xf32>
      %24 = vector.shape_cast %23 : vector<32xf32> to vector<1x32xf32>
      %25 = vector.shape_cast %24 : vector<1x32xf32> to vector<1x1x32xf32>
      %26 = arith.addf %22, %25 : vector<1x1x32xf32>
      %c0_12 = arith.constant 0 : index
      %c0_13 = arith.constant 0 : index
      %c0_14 = arith.constant 0 : index
      %27 = vector.load %arg3[%c0_12, %c0_13, %c0_14] : memref<1x1x32xf32, #tpu.memory_space<vmem>>, vector<1x1x32xf32>
      tpu.vector_store %arg3[%c0_12, %c0_13, %c0_14], %26 {strides = array<i32>} : memref<1x1x32xf32, #tpu.memory_space<vmem>>, vector<1x1x32xf32>,
    } else {
    }
    return
  }
  func.func @transform_0(%arg0: i32, %arg1: i32) -> (i32, i32) {
    %c1_i32 = arith.constant 1 : i32
    %0 = arith.muli %arg0, %c1_i32 : i32
    %1 = arith.addi %0, %arg1 : i32
    %c0_i32 = arith.constant 0 : i32
    %2 = arith.minsi %1, %c0_i32 : i32
    %c0_i32_0 = arith.constant 0 : i32
    %c0_i32_1 = arith.constant 0 : i32
    return %2, %c0_i32_0 : i32, i32
  }
  func.func @transform_1(%arg0: i32, %arg1: i32) -> (i32, i32, i32) {
    %c0_i32 = arith.constant 0 : i32
    %c0_i32_0 = arith.constant 0 : i32
    %c0_i32_1 = arith.constant 0 : i32
    return %arg0, %c0_i32, %c0_i32_0 : i32, i32, i32
  }
}

</mosaic_0001>

<llo_original>
// kernel: _f2_forward_jit.3
$region0: #{_f2_forward_jit.3}
  #allocation0 [shape = 'u32[]', space=smem, size = 0x4, offset = 0x4, fixed_abs, tag = 'smem constant byte address 0x4 - core index']
  #allocation1 [shape = 'u32[144,128]{1,0:T(1,128)}', space=vmem, size = 0x12000, scoped, tag = 'internal scratch']
  %s0 = inlined_call_operand.hbm [shape: f32[16,32], index: 0, kind: input, shape index: {}]
  %s1 = inlined_call_operand.vmem [shape: f32[1,1,32], index: 1, kind: output, shape index: {}]
  %s2 = sld [smem:[#allocation0]]
  $region30: #{_f2_forward_jit.3} parent=0
    _
  %s4 = ssub.s32 1, %s2
  %s5 = scalar_select 0, %s4, %s2
  $region1: #{_f2_forward_jit.3} parent=0
    #allocation2 [shape = 'u8[8192]{0}', space=vmem, size = 0x2000, scoped, tag = 'input window, operand 0, single buffered']
    #allocation3 [shape = 's32[1]{0}', space=sflag, size = 0x4, scoped, tag = 'scoped memory for _f2_forward_jit.3']
    %6 = vsyncpa [#allocation3], 0
    // Predicated region
    $region2: #{_f2_forward_jit.3} parent=1 // pred_check
      _
    $region3: #{_f2_forward_jit.3} parent=1 // pred_check_branch
      %8 = sbr.rel (0) target = $region5
    $region4: #{_f2_forward_jit.3} parent=1 // pred_region
      %s9 = sadd.s32 0, 0
      %p10 = scmp.lt.s32.totalorder %s9, 0
      %s11 = scalar_select %p10, %s9, 0
      %s12 = smul.u32 2, %s11
      %s14 = ssub.s32 256, 256
      %15 = vsyncadd [#allocation3], %s14
      %s16 = smul.addr %s12, 128
      %s17 = scalar_lea.hbm %s0, %s16
      %s18 = sshll.u32 [#allocation2], 4
      %s19 = int_to_ptr.vmem [resolvable:$true] %s18
      %24 = dma.hbm_to_vmem [thread:$0]  %s17, 256, %s19, [#allocation3], 128, 128, 8
    $region5: #{_f2_forward_jit.3} parent=1 // pred_fallthru
      _
    // Predicated region
    $region6: #{_f2_forward_jit.3} parent=1 // pred_check
      _
    $region7: #{_f2_forward_jit.3} parent=1 // pred_check_branch
      %26 = sbr.rel (0) target = $region9
    $region8: #{_f2_forward_jit.3} parent=1 // pred_region
      %27 = dma.done [#allocation3], 256
    $region9: #{_f2_forward_jit.3} parent=1 // pred_fallthru
      _
    %s28 = sadd.s32 0, 0
    %p29 = scmp.lt.s32.totalorder %s28, 0
    %s30 = scalar_select %p29, %s28, 0
    %s31 = smul.u32 2, %s30
    %p32 = scmp.eq.s32.totalorder 0, 0
    // Predicated region
    $region10: #{_f2_forward_jit.3} parent=1 // pred_check
      %p33 = pneg %p32
    $region11: #{_f2_forward_jit.3} parent=1 // pred_check_branch
      %35 = sbr.rel (%p33) target = $region13
    $region12: #{_f2_forward_jit.3} parent=1 // pred_region
      %vm36 = vcmask 253952
      %37 = vst.msk [vmem:[%s1] sm:$0x1] %vm36, 0.0
    $region13: #{_f2_forward_jit.3} parent=1 // pred_fallthru
      _
    %v38 = vld [vmem:[#allocation2] sm:$0xff]
    %v39 = vld [vmem:[#allocation2 + $0x8] sm:$0xff]
    %v40 = vmul.f32 %v38, %v38
    %v41 = vmul.f32 %v39, %v39
    %s42 = sadd.s32 0, 0
    %s43 = smul.u32 %s42, 16
    %s44 = ssub.s32 16, %s43
    %p45 = scmp.ge.s32.totalorder %s44, 16
    // Predicated region
    $region14: #{_f2_forward_jit.3} parent=1 // pred_check
      %p46 = pneg %p45
    $region15: #{_f2_forward_jit.3} parent=1 // pred_check_branch
      %48 = sbr.rel (%p46) target = $region17
    $region16: #{_f2_forward_jit.3} parent=1 // pred_region
      %v49 = vld [vmem:[%s1] sm:$0x1]
      %vm50 = vcmask 261120
      %v51 = vsel %vm50, %v40, 0.0
      %v52 = vsel %vm50, %v41, 0.0
      %v53 = vadd.f32 %v51, %v52
      %v54 = vrot.slane %v53, 4
      %v55 = vadd.f32 %v53, %v54
      %v56 = vrot.slane %v55, 2
      %v57 = vadd.f32 %v55, %v56
      %v58 = vrot.slane %v57, 1
      %v59 = vadd.f32 %v57, %v58
      %v60 = vadd.f32 %v49, %v59
      %vm61 = vcmask 253952
      %62 = vst.msk [vmem:[%s1] sm:$0x1] %vm61, %v60
    $region17: #{_f2_forward_jit.3} parent=1 // pred_fallthru
      _
    %p63 = scmp.gt.s32.totalorder %s44, 0
    %p64 = scmp.lt.s32.totalorder %s44, 16
    %p65 = pnand %p63, %p64
    %p66 = pneg %p65
    // Predicated region
    $region18: #{_f2_forward_jit.3} parent=1 // pred_check
      _
    $region19: #{_f2_forward_jit.3} parent=1 // pred_check_branch
      %68 = sbr.rel (%p65) target = $region21
    $region20: #{_f2_forward_jit.3} parent=1 // pred_region
      %v69 = vlaneseq
      %v70 = vshrl.u32 %v69, 7
      %v71 = vadd.s32 %v70, 8
      %v72 = vstv %s44
      %vm73 = vcmp.lt.s32.totalorder %v70, %v72
      %vm74 = vcmp.lt.s32.totalorder %v71, %v72
      %v75 = vsel %vm73, %v40, 0.0
      %v76 = vsel %vm74, %v41, 0.0
      %v77 = vld [vmem:[%s1] sm:$0x1]
      %vm78 = vcmask 261120
      %v79 = vsel %vm78, %v75, 0.0
      %v80 = vsel %vm78, %v76, 0.0
      %v81 = vadd.f32 %v79, %v80
      %v82 = vrot.slane %v81, 4
      %v83 = vadd.f32 %v81, %v82
      %v84 = vrot.slane %v83, 2
      %v85 = vadd.f32 %v83, %v84
      %v86 = vrot.slane %v85, 1
      %v87 = vadd.f32 %v85, %v86
      %v88 = vadd.f32 %v77, %v87
      %vm89 = vcmask 253952
      %90 = vst.msk [vmem:[%s1] sm:$0x1] %vm89, %v88
    $region21: #{_f2_forward_jit.3} parent=1 // pred_fallthru
      _
    // Predicated region
    $region22: #{_f2_forward_jit.3} parent=1 // pred_check
      _
    $region23: #{_f2_forward_jit.3} parent=1 // pred_check_branch
      %92 = sbr.rel (0) target = $region25
    $region24: #{_f2_forward_jit.3} parent=1 // pred_region
      _
    $region25: #{_f2_forward_jit.3} parent=1 // pred_fallthru
      _
    // Predicated region
    $region26: #{_f2_forward_jit.3} parent=1 // pred_check
      _
    $region27: #{_f2_forward_jit.3} parent=1 // pred_check_branch
      %94 = sbr.rel (0) target = $region29
    $region28: #{_f2_forward_jit.3} parent=1 // pred_region
      _
    $region29: #{_f2_forward_jit.3} parent=1 // pred_fallthru
      _
    %95 = vsyncpa [#allocation3], 1

// kernel: _f2_forward_jit.4
$region0: #{_f2_forward_jit.4}
  #allocation0 [shape = 'u32[]', space=smem, size = 0x4, offset = 0x4, fixed_abs, tag = 'smem constant byte address 0x4 - core index']
  #allocation1 [shape = 'u32[144,128]{1,0:T(1,128)}', space=vmem, size = 0x12000, scoped, tag = 'internal scratch']
  %s0 = inlined_call_operand.vmem [shape: f32[16,32], index: 0, kind: input, shape index: {}]
  %s1 = inlined_call_operand.vmem [shape: f32[1,1,32], index: 1, kind: output, shape index: {}]
  %s2 = sld [smem:[#allocation0]]
  $region26: #{_f2_forward_jit.4} parent=0
    _
  %s4 = ssub.s32 1, %s2
  %s5 = scalar_select 0, %s4, %s2
  // Predicated region
  $region2: #{_f2_forward_jit.4} parent=0 // pred_check
    _
  $region3: #{_f2_forward_jit.4} parent=0 // pred_check_branch
    %7 = sbr.rel (0) target = $region5
  $region4: #{_f2_forward_jit.4} parent=0 // pred_region
    %s8 = sadd.s32 0, 0
    %p9 = scmp.lt.s32.totalorder %s8, 0
    %s10 = scalar_select %p9, %s8, 0
    %s11 = smul.u32 2, %s10
    %p12 = scmp.lt.s32.totalorder %s11, 1
    %s13 = scalar_select %p12, %s11, 1
    %s14 = smul.addr %s13, 8
    %s15 = scalar_lea.vmem %s0, %s14
    %s16 = sadd.s32 0, 0
    %p17 = scmp.lt.s32.totalorder %s16, 0
    %s18 = scalar_select %p17, %s16, 0
    %s19 = smul.u32 2, %s18
  $region5: #{_f2_forward_jit.4} parent=0 // pred_fallthru
    _
  %s20 = sadd.s32 0, 0
  %p21 = scmp.lt.s32.totalorder %s20, 0
  %s22 = scalar_select %p21, %s20, 0
  %s23 = smul.u32 2, %s22
  %p24 = scmp.lt.s32.totalorder %s23, 1
  %s25 = scalar_select %p24, %s23, 1
  %s26 = smul.addr %s25, 8
  %s27 = scalar_lea.vmem %s0, %s26
  %s28 = sadd.s32 0, 0
  %p29 = scmp.lt.s32.totalorder %s28, 0
  %s30 = scalar_select %p29, %s28, 0
  %s31 = smul.u32 2, %s30
  %p32 = scmp.lt.s32.totalorder %s31, 1
  %s33 = scalar_select %p32, %s31, 1
  %s34 = smul.addr %s33, 8
  %s35 = scalar_lea.vmem %s0, %s34
  %s36 = sadd.s32 0, 0
  %p37 = scmp.lt.s32.totalorder %s36, 0
  %s38 = scalar_select %p37, %s36, 0
  %s39 = smul.u32 2, %s38
  %p40 = scmp.eq.s32.totalorder 0, 0
  // Predicated region
  $region6: #{_f2_forward_jit.4} parent=0 // pred_check
    %p41 = pneg %p40
  $region7: #{_f2_forward_jit.4} parent=0 // pred_check_branch
    %43 = sbr.rel (%p41) target = $region9
  $region8: #{_f2_forward_jit.4} parent=0 // pred_region
    %vm44 = vcmask 253952
    %45 = vst.msk [vmem:[%s1] sm:$0x1] %vm44, 0.0
  $region9: #{_f2_forward_jit.4} parent=0 // pred_fallthru
    _
  %v46 = vld [vmem:[%s35] sm:$0xff]
  %v47 = vld [vmem:[%s35 + $0x8] sm:$0xff]
  %v48 = vmul.f32 %v46, %v46
  %v49 = vmul.f32 %v47, %v47
  %s50 = sadd.s32 0, 0
  %s51 = smul.u32 %s50, 16
  %s52 = ssub.s32 16, %s51
  %p53 = scmp.ge.s32.totalorder %s52, 16
  // Predicated region
  $region10: #{_f2_forward_jit.4} parent=0 // pred_check
    %p54 = pneg %p53
  $region11: #{_f2_forward_jit.4} parent=0 // pred_check_branch
    %56 = sbr.rel (%p54) target = $region13
  $region12: #{_f2_forward_jit.4} parent=0 // pred_region
    %v57 = vld [vmem:[%s1] sm:$0x1]
    %vm58 = vcmask 261120
    %v59 = vsel %vm58, %v48, 0.0
    %v60 = vsel %vm58, %v49, 0.0
    %v61 = vadd.f32 %v59, %v60
    %v62 = vrot.slane %v61, 4
    %v63 = vadd.f32 %v61, %v62
    %v64 = vrot.slane %v63, 2
    %v65 = vadd.f32 %v63, %v64
    %v66 = vrot.slane %v65, 1
    %v67 = vadd.f32 %v65, %v66
    %v68 = vadd.f32 %v57, %v67
    %vm69 = vcmask 253952
    %70 = vst.msk [vmem:[%s1] sm:$0x1] %vm69, %v68
  $region13: #{_f2_forward_jit.4} parent=0 // pred_fallthru
    _
  %p71 = scmp.gt.s32.totalorder %s52, 0
  %p72 = scmp.lt.s32.totalorder %s52, 16
  %p73 = pnand %p71, %p72
  %p74 = pneg %p73
  // Predicated region
  $region14: #{_f2_forward_jit.4} parent=0 // pred_check
    _
  $region15: #{_f2_forward_jit.4} parent=0 // pred_check_branch
    %76 = sbr.rel (%p73) target = $region17
  $region16: #{_f2_forward_jit.4} parent=0 // pred_region
    %v77 = vlaneseq
    %v78 = vshrl.u32 %v77, 7
    %v79 = vadd.s32 %v78, 8
    %v80 = vstv %s52
    %vm81 = vcmp.lt.s32.totalorder %v78, %v80
    %vm82 = vcmp.lt.s32.totalorder %v79, %v80
    %v83 = vsel %vm81, %v48, 0.0
    %v84 = vsel %vm82, %v49, 0.0
    %v85 = vld [vmem:[%s1] sm:$0x1]
    %vm86 = vcmask 261120
    %v87 = vsel %vm86, %v83, 0.0
    %v88 = vsel %vm86, %v84, 0.0
    %v89 = vadd.f32 %v87, %v88
    %v90 = vrot.slane %v89, 4
    %v91 = vadd.f32 %v89, %v90
    %v92 = vrot.slane %v91, 2
    %v93 = vadd.f32 %v91, %v92
    %v94 = vrot.slane %v93, 1
    %v95 = vadd.f32 %v93, %v94
    %v96 = vadd.f32 %v85, %v95
    %vm97 = vcmask 253952
    %98 = vst.msk [vmem:[%s1] sm:$0x1] %vm97, %v96
  $region17: #{_f2_forward_jit.4} parent=0 // pred_fallthru
    _
  // Predicated region
  $region18: #{_f2_forward_jit.4} parent=0 // pred_check
    _
  $region19: #{_f2_forward_jit.4} parent=0 // pred_check_branch
    %100 = sbr.rel (0) target = $region21
  $region20: #{_f2_forward_jit.4} parent=0 // pred_region
    _
  $region21: #{_f2_forward_jit.4} parent=0 // pred_fallthru
    _
  // Predicated region
  $region22: #{_f2_forward_jit.4} parent=0 // pred_check
    _
  $region23: #{_f2_forward_jit.4} parent=0 // pred_check_branch
    %102 = sbr.rel (0) target = $region25
  $region24: #{_f2_forward_jit.4} parent=0 // pred_region
    _
  $region25: #{_f2_forward_jit.4} parent=0 // pred_fallthru
    _

</llo_original>
